<compile_context>
chip_gen: v7x
topology: tpu7x:2x2x1
jax: 0.10.0
libtpu: 0.0.40
codegen_flags: <defaults>
</compile_context>

<pallas_src>
import functools

import jax
import jax.numpy as jnp
from jax.experimental import pallas as pl
from jax.experimental.pallas import tpu as pltpu


def _round_up(a, b):
    return (a + b - 1) // b * b


def highway_kernel(x_ref, wp_ref, wg_ref, bp_ref, bg_ref, o_ref, *, mxu_dtype):
    x = x_ref[...]
    xm = x if mxu_dtype is None else x.astype(mxu_dtype)

    # Two MXU matmuls with f32 accumulation (weights resident in VMEM).
    yp = jnp.dot(xm, wp_ref[...], preferred_element_type=jnp.float32) + bp_ref[...]
    yg = jnp.dot(xm, wg_ref[...], preferred_element_type=jnp.float32) + bg_ref[...]

    proj = jnp.maximum(yp, 0.0)                    # relu     (VPU)
    gate = 0.5 * (jnp.tanh(0.5 * yg) + 1.0)        # sigmoid  (single EUP tanh)

    xf = x.astype(jnp.float32)
    # Highway combine rewritten as x + g*(p - x): one fewer vmul per vreg.
    o_ref[...] = (xf + gate * (proj - xf)).astype(o_ref.dtype)


def _pick_row_tile(n_rows, sublane, tm_default):
    """Row-tile size: full-array block for tiny batches, >=2 tiles for
    mid-sized batches (v7x megacore sharding), tm_default for large ones."""
    if n_rows <= 256:
        return n_rows                              # block == full dim: always legal
    if n_rows <= tm_default:
        return _round_up(pl.cdiv(n_rows, 2), sublane)
    return _round_up(tm_default, sublane)


def highway_forward(x, w_proj, b_proj, w_gate, b_gate, *, tm=512, mxu_dtype=None):
    """Highway forward.

    x      : [N, E]  (rows = flattened batch, E = word_embed_size)
    w_proj : [E, E]  PyTorch nn.Linear layout (out_features, in_features)
    b_proj : [E]
    w_gate : [E, E]  PyTorch layout
    b_gate : [E]
    mxu_dtype : optional dtype (e.g. jnp.bfloat16) used only for the matmul
                operands; accumulation and the combine stay in f32.

    NOTE: callers invoking this repeatedly should pre-transpose the weights
    (or wrap the call in jit with constant weights) so the W^T copies below
    are not re-materialized every step.
    """
    N, E = x.shape
    dt = x.dtype
    dot_dt = mxu_dtype if mxu_dtype is not None else dt

    sublane = {4: 8, 2: 16, 1: 32}[jnp.dtype(dt).itemsize]
    tm = _pick_row_tile(N, sublane, tm)
    grid_m = pl.cdiv(N, tm)
    n_pad = grid_m * tm

    # Ragged-tail fallback only; the common case (tm divides N) copies nothing.
    x_in = x if n_pad == N else jnp.pad(x, ((0, n_pad - N), (0, 0)))

    # PyTorch Linear weights are [out, in]; the kernel wants [in, out].
    wp_t = w_proj.T.astype(dot_dt)
    wg_t = w_gate.T.astype(dot_dt)
    bp = b_proj.astype(jnp.float32).reshape(1, E)
    bg = b_gate.astype(jnp.float32).reshape(1, E)

    # Raise the scoped VMEM limit only when resident weights + double-buffered
    # x/out tiles exceed the conservative default (v5e: ~16 MiB scoped).
    wb = jnp.dtype(dot_dt).itemsize
    xb = jnp.dtype(dt).itemsize
    vmem_need = (2 * 2 * E * E * wb          # two weights, double-buffered
                 + 2 * 2 * tm * E * xb       # x + out tiles, double-buffered
                 + 6 * tm * E * 4)           # f32 temporaries (yp/yg/proj/gate/xf)
    cp_kwargs = dict(dimension_semantics=("parallel",))
    if vmem_need > 16 * 1024 * 1024:
        cp_kwargs["vmem_limit_bytes"] = min(int(vmem_need * 1.25), 64 * 1024 * 1024)

    out = pl.pallas_call(
        functools.partial(highway_kernel, mxu_dtype=mxu_dtype),
        out_shape=jax.ShapeDtypeStruct((n_pad, E), dt),
        grid_spec=pltpu.PrefetchScalarGridSpec(
            num_scalar_prefetch=0,
            grid=(grid_m,),
            in_specs=[
                pl.BlockSpec((tm, E), lambda i: (i, 0)),   # x row tile
                pl.BlockSpec((E, E), lambda i: (0, 0)),    # Wp^T (resident)
                pl.BlockSpec((E, E), lambda i: (0, 0)),    # Wg^T (resident)
                pl.BlockSpec((1, E), lambda i: (0, 0)),    # bp   (resident)
                pl.BlockSpec((1, E), lambda i: (0, 0)),    # bg   (resident)
            ],
            out_specs=pl.BlockSpec((tm, E), lambda i: (i, 0)),
        ),
        compiler_params=pltpu.CompilerParams(**cp_kwargs),
    )(x_in, wp_t, wg_t, bp, bg)

    return out if n_pad == N else out[:N]


def highway_reference(x, w_proj, b_proj, w_gate, b_gate):
    x_proj = jax.nn.relu(x @ w_proj.T + b_proj)
    x_gate = jax.nn.sigmoid(x @ w_gate.T + b_gate)
    return x_proj * x_gate + (1.0 - x_gate) * x


if __name__ == "__main__":
    word_embed_size = 32   # E
    batch = 16             # N (e.g. batch * sentence_length flattened)

    key = jax.random.PRNGKey(0)
    kx, kwp, kbp, kwg, kbg = jax.random.split(key, 5)

    x = jax.random.normal(kx, (batch, word_embed_size), dtype=jnp.float32)

    # nn.Linear layout: weight is [out_features, in_features].
    bound = 1.0 / (word_embed_size ** 0.5)
    w_proj = jax.random.uniform(kwp, (word_embed_size, word_embed_size),
                                minval=-bound, maxval=bound, dtype=jnp.float32)
    b_proj = jax.random.uniform(kbp, (word_embed_size,),
                                minval=-bound, maxval=bound, dtype=jnp.float32)
    w_gate = jax.random.uniform(kwg, (word_embed_size, word_embed_size),
                                minval=-bound, maxval=bound, dtype=jnp.float32)
    b_gate = jax.random.uniform(kbg, (word_embed_size,),
                                minval=-bound, maxval=bound, dtype=jnp.float32)

    out = highway_forward(x, w_proj, b_proj, w_gate, b_gate)
    out = jax.block_until_ready(out)

    ref = highway_reference(x, w_proj, b_proj, w_gate, b_gate)
    assert out.shape == (batch, word_embed_size)
    assert jnp.allclose(out, ref, atol=1e-5, rtol=1e-5), "mismatch vs reference"

    print("KERNEL_OK")
</pallas_src>

<mosaic_0001>
module attributes {stable_mosaic.version = 11 : i64} {
  func.func @highway_kernel(%arg0: i32, %arg1: memref<16x32xf32, #tpu.memory_space<vmem>>, %arg2: memref<32x32xf32, #tpu.memory_space<vmem>>, %arg3: memref<32x32xf32, #tpu.memory_space<vmem>>, %arg4: memref<1x32xf32, #tpu.memory_space<vmem>>, %arg5: memref<1x32xf32, #tpu.memory_space<vmem>>, %arg6: memref<16x32xf32, #tpu.memory_space<vmem>>) attributes {dimension_semantics = [#tpu.dimension_semantics<parallel>], iteration_bounds = array<i64: 1>, scalar_prefetch = 0 : i64, scratch_operands = 0 : i64, tpu.core_type = #tpu.core_type<tc>, window_params = [{transform_indices = @transform_0, window_bounds = array<i64: 16, 32>}, {pipeline_mode = #tpu.pipeline_mode<synchronous>, transform_indices = @transform_1, window_bounds = array<i64: 32, 32>}, {pipeline_mode = #tpu.pipeline_mode<synchronous>, transform_indices = @transform_2, window_bounds = array<i64: 32, 32>}, {pipeline_mode = #tpu.pipeline_mode<synchronous>, transform_indices = @transform_3, window_bounds = array<i64: 1, 32>}, {pipeline_mode = #tpu.pipeline_mode<synchronous>, transform_indices = @transform_4, window_bounds = array<i64: 1, 32>}, {transform_indices = @transform_5, window_bounds = array<i64: 16, 32>}]} {
    %c0 = arith.constant 0 : index
    %c0_0 = arith.constant 0 : index
    %0 = vector.load %arg1[%c0, %c0_0] : memref<16x32xf32, #tpu.memory_space<vmem>>, vector<16x32xf32>
    %c0_1 = arith.constant 0 : index
    %c0_2 = arith.constant 0 : index
    %1 = vector.load %arg2[%c0_1, %c0_2] : memref<32x32xf32, #tpu.memory_space<vmem>>, vector<32x32xf32>
    %cst = arith.constant dense<0.000000e+00> : vector<16x32xf32>
    %2 = tpu.matmul %0, %1, %cst {dimension_numbers = #tpu.dot_dimension_numbers<[1], [0], [0], [1], [0, 0, 1, 1], [], []>} : vector<16x32xf32>, vector<32x32xf32>, vector<16x32xf32> -> vector<16x32xf32>
    %c0_3 = arith.constant 0 : index
    %c0_4 = arith.constant 0 : index
    %3 = vector.load %arg4[%c0_3, %c0_4] : memref<1x32xf32, #tpu.memory_space<vmem>>, vector<1x32xf32>
    %4 = vector.broadcast %3 : vector<1x32xf32> to vector<16x32xf32>
    %5 = arith.addf %2, %4 : vector<16x32xf32>
    %c0_5 = arith.constant 0 : index
    %c0_6 = arith.constant 0 : index
    %6 = vector.load %arg3[%c0_5, %c0_6] : memref<32x32xf32, #tpu.memory_space<vmem>>, vector<32x32xf32>
    %cst_7 = arith.constant dense<0.000000e+00> : vector<16x32xf32>
    %7 = tpu.matmul %0, %6, %cst_7 {dimension_numbers = #tpu.dot_dimension_numbers<[1], [0], [0], [1], [0, 0, 1, 1], [], []>} : vector<16x32xf32>, vector<32x32xf32>, vector<16x32xf32> -> vector<16x32xf32>
    %c0_8 = arith.constant 0 : index
    %c0_9 = arith.constant 0 : index
    %8 = vector.load %arg5[%c0_8, %c0_9] : memref<1x32xf32, #tpu.memory_space<vmem>>, vector<1x32xf32>
    %9 = vector.broadcast %8 : vector<1x32xf32> to vector<16x32xf32>
    %10 = arith.addf %7, %9 : vector<16x32xf32>
    %cst_10 = arith.constant 0.000000e+00 : f32
    %11 = vector.broadcast %cst_10 : f32 to vector<16x32xf32>
    %12 = arith.maximumf %5, %11 : vector<16x32xf32>
    %cst_11 = arith.constant 5.000000e-01 : f32
    %13 = vector.broadcast %cst_11 : f32 to vector<16x32xf32>
    %14 = arith.mulf %13, %10 : vector<16x32xf32>
    %15 = math.tanh %14 : vector<16x32xf32>
    %cst_12 = arith.constant 1.000000e+00 : f32
    %16 = vector.broadcast %cst_12 : f32 to vector<16x32xf32>
    %17 = arith.addf %15, %16 : vector<16x32xf32>
    %cst_13 = arith.constant 5.000000e-01 : f32
    %18 = vector.broadcast %cst_13 : f32 to vector<16x32xf32>
    %19 = arith.mulf %18, %17 : vector<16x32xf32>
    %20 = arith.subf %12, %0 : vector<16x32xf32>
    %21 = arith.mulf %19, %20 : vector<16x32xf32>
    %22 = arith.addf %0, %21 : vector<16x32xf32>
    %c0_14 = arith.constant 0 : index
    %c0_15 = arith.constant 0 : index
    %23 = vector.load %arg6[%c0_14, %c0_15] : memref<16x32xf32, #tpu.memory_space<vmem>>, vector<16x32xf32>
    tpu.vector_store %arg6[%c0_14, %c0_15], %22 {strides = array<i32>} : memref<16x32xf32, #tpu.memory_space<vmem>>, vector<16x32xf32>,
    return
  }
  func.func @transform_0(%arg0: i32) -> (i32, i32) {
    %c0_i32 = arith.constant 0 : i32
    %c0_i32_0 = arith.constant 0 : i32
    return %arg0, %c0_i32 : i32, i32
  }
  func.func @transform_1(%arg0: i32) -> (i32, i32) {
    %c0_i32 = arith.constant 0 : i32
    %c0_i32_0 = arith.constant 0 : i32
    %c0_i32_1 = arith.constant 0 : i32
    return %c0_i32, %c0_i32_0 : i32, i32
  }
  func.func @transform_2(%arg0: i32) -> (i32, i32) {
    %c0_i32 = arith.constant 0 : i32
    %c0_i32_0 = arith.constant 0 : i32
    %c0_i32_1 = arith.constant 0 : i32
    return %c0_i32, %c0_i32_0 : i32, i32
  }
  func.func @transform_3(%arg0: i32) -> (i32, i32) {
    %c0_i32 = arith.constant 0 : i32
    %c0_i32_0 = arith.constant 0 : i32
    %c0_i32_1 = arith.constant 0 : i32
    return %c0_i32, %c0_i32_0 : i32, i32
  }
  func.func @transform_4(%arg0: i32) -> (i32, i32) {
    %c0_i32 = arith.constant 0 : i32
    %c0_i32_0 = arith.constant 0 : i32
    %c0_i32_1 = arith.constant 0 : i32
    return %c0_i32, %c0_i32_0 : i32, i32
  }
  func.func @transform_5(%arg0: i32) -> (i32, i32) {
    %c0_i32 = arith.constant 0 : i32
    %c0_i32_0 = arith.constant 0 : i32
    return %arg0, %c0_i32 : i32, i32
  }
}

</mosaic_0001>

<llo_original>
// kernel: tpu_custom_call.1
$region0: #{tpu_custom_call.1}
  #allocation0 [shape = 'u32[]', space=smem, size = 0x4, offset = 0x4, fixed_abs, tag = 'smem constant byte address 0x4 - core index']
  #allocation1 [shape = 'u32[144,128]{1,0:T(1,128)}', space=vmem, size = 0x12000, scoped, tag = 'internal scratch']
  %s0 = inlined_call_operand.hbm [shape: f32[16,32], index: 0, kind: input, shape index: {}]
  %s1 = inlined_call_operand.hbm [shape: f32[32,32], index: 1, kind: input, shape index: {}]
  %s2 = inlined_call_operand.hbm [shape: f32[32,32], index: 2, kind: input, shape index: {}]
  %s3 = inlined_call_operand.vmem [shape: f32[1,32], index: 3, kind: input, shape index: {}]
  %s4 = inlined_call_operand.vmem [shape: f32[1,32], index: 4, kind: input, shape index: {}]
  %s5 = inlined_call_operand.hbm [shape: f32[16,32], index: 5, kind: output, shape index: {}]
  %s6 = sld [smem:[#allocation0]]
  $region42: #{tpu_custom_call.1} parent=0
    _
  %s8 = ssub.s32 1, %s6
  %s9 = scalar_select 0, %s8, %s6
  $region1: #{tpu_custom_call.1} parent=0
    #allocation2 [shape = 'u8[8192]{0}', space=vmem, size = 0x2000, scoped, tag = 'input window, operand 0, single buffered']
    #allocation3 [shape = 's32[1]{0}', space=sflag, size = 0x4, scoped, tag = 'scoped memory for tpu_custom_call.1']
    #allocation4 [shape = 's32[1]{0}', space=sflag, size = 0x4, scoped, tag = 'scoped memory for tpu_custom_call.1']
    #allocation5 [shape = 'u8[16384]{0}', space=vmem, size = 0x4000, scoped, tag = 'input window, operand 1, single buffered']
    #allocation6 [shape = 's32[1]{0}', space=sflag, size = 0x4, scoped, tag = 'scoped memory for tpu_custom_call.1']
    #allocation7 [shape = 'u8[16384]{0}', space=vmem, size = 0x4000, scoped, tag = 'input window, operand 2, single buffered']
    #allocation8 [shape = 'u8[8192]{0}', space=vmem, size = 0x2000, scoped, tag = 'output window, operand 0, single buffered']
    %10 = vsyncpa [#allocation3], 0
    %11 = vsyncpa [#allocation6], 0
    %12 = vsyncpa [#allocation4], 0
    // Predicated region
    $region2: #{tpu_custom_call.1} parent=1 // pred_check
      _
    $region3: #{tpu_custom_call.1} parent=1 // pred_check_branch
      %14 = sbr.rel (0) target = $region5
    $region4: #{tpu_custom_call.1} parent=1 // pred_region
      %s16 = ssub.s32 256, 256
      %17 = vsyncadd [#allocation3], %s16
      %s18 = sshll.u32 [#allocation2], 4
      %s19 = int_to_ptr.vmem [resolvable:$true] %s18
      %24 = dma.hbm_to_vmem [thread:$0]  %s0, 256, %s19, [#allocation3], 128, 128, 8
    $region5: #{tpu_custom_call.1} parent=1 // pred_fallthru
      _
    // Predicated region
    $region6: #{tpu_custom_call.1} parent=1 // pred_check
      _
    $region7: #{tpu_custom_call.1} parent=1 // pred_check_branch
      %26 = sbr.rel (0) target = $region9
    $region8: #{tpu_custom_call.1} parent=1 // pred_region
      %s28 = ssub.s32 512, 512
      %29 = vsyncadd [#allocation6], %s28
      %s30 = sshll.u32 [#allocation5], 4
      %s31 = int_to_ptr.vmem [resolvable:$true] %s30
      %36 = dma.hbm_to_vmem [thread:$0]  %s1, 512, %s31, [#allocation6], 128, 128, 8
    $region9: #{tpu_custom_call.1} parent=1 // pred_fallthru
      _
    // Predicated region
    $region10: #{tpu_custom_call.1} parent=1 // pred_check
      _
    $region11: #{tpu_custom_call.1} parent=1 // pred_check_branch
      %38 = sbr.rel (0) target = $region13
    $region12: #{tpu_custom_call.1} parent=1 // pred_region
      %s40 = ssub.s32 512, 512
      %41 = vsyncadd [#allocation6], %s40
      %s42 = sshll.u32 [#allocation7], 4
      %s43 = int_to_ptr.vmem [resolvable:$true] %s42
      %48 = dma.hbm_to_vmem [thread:$0]  %s2, 512, %s43, [#allocation6], 128, 128, 8
    $region13: #{tpu_custom_call.1} parent=1 // pred_fallthru
      _
    // Predicated region
    $region14: #{tpu_custom_call.1} parent=1 // pred_check
      _
    $region15: #{tpu_custom_call.1} parent=1 // pred_check_branch
      %50 = sbr.rel (0) target = $region17
    $region16: #{tpu_custom_call.1} parent=1 // pred_region
      _
    $region17: #{tpu_custom_call.1} parent=1 // pred_fallthru
      _
    // Predicated region
    $region18: #{tpu_custom_call.1} parent=1 // pred_check
      _
    $region19: #{tpu_custom_call.1} parent=1 // pred_check_branch
      %52 = sbr.rel (0) target = $region21
    $region20: #{tpu_custom_call.1} parent=1 // pred_region
      _
    $region21: #{tpu_custom_call.1} parent=1 // pred_fallthru
      _
    // Predicated region
    $region22: #{tpu_custom_call.1} parent=1 // pred_check
      _
    $region23: #{tpu_custom_call.1} parent=1 // pred_check_branch
      %54 = sbr.rel (0) target = $region25
    $region24: #{tpu_custom_call.1} parent=1 // pred_region
      %55 = dma.done [#allocation3], 256
    $region25: #{tpu_custom_call.1} parent=1 // pred_fallthru
      _
    // Predicated region
    $region26: #{tpu_custom_call.1} parent=1 // pred_check
      _
    $region27: #{tpu_custom_call.1} parent=1 // pred_check_branch
      %57 = sbr.rel (0) target = $region29
    $region28: #{tpu_custom_call.1} parent=1 // pred_region
      %58 = dma.done [#allocation6], 512
    $region29: #{tpu_custom_call.1} parent=1 // pred_fallthru
      _
    // Predicated region
    $region30: #{tpu_custom_call.1} parent=1 // pred_check
      _
    $region31: #{tpu_custom_call.1} parent=1 // pred_check_branch
      %60 = sbr.rel (0) target = $region33
    $region32: #{tpu_custom_call.1} parent=1 // pred_region
      %61 = dma.done [#allocation6], 512
    $region33: #{tpu_custom_call.1} parent=1 // pred_fallthru
      _
    %v62 = vld [vmem:[#allocation2] sm:$0xff]
    %v63 = vld [vmem:[#allocation2 + $0x8] sm:$0xff]
    %v64 = vld [vmem:[#allocation5] sm:$0xff]
    %v65 = vld [vmem:[#allocation5 + $0x8] sm:$0xff]
    %v66 = vld [vmem:[#allocation5 + $0x10] sm:$0xff]
    %v67 = vld [vmem:[#allocation5 + $0x18] sm:$0xff]
    %v68 = vld [vmem:[%s3] sm:$0x1]
    %v70 = vlaneseq
    %v71 = vshrl.u32 %v70, 7
    %v72 = vsub.s32 0, %v71
    %v73 = vrot.slane %v68, %v72
    %vm75 = vcmask 261120
    %v77 = vsel %vm75, %v62, 0
    %v80 = vsel %vm75, %v63, 0
    %82 = vmatprep.subr.mxu0 0.0
    %83 = vmatpush1.msra.mxu0 %v64
    %84 = vmatprep.subr.mxu0 0.0
    %85 = vmatpush1.msra.mxu0 %v65
    %86 = vmatprep.subr.mxu0 0.0
    %87 = vmatpush1.msra.mxu0 %v66
    %88 = vmatprep.subr.mxu0 0.0
    %89 = vmatpush1.msra.mxu0 %v67
    %90 = vmatprep.subr.mxu0 0.0
    %91 = vmatpush1.msra.mxu0 0.0
    %92 = vmatprep.subr.mxu0 0.0
    %93 = vmatpush1.msra.mxu0 0.0
    %94 = vmatprep.subr.mxu0 0.0
    %95 = vmatpush1.msra.mxu0 0.0
    %96 = vmatprep.subr.mxu0 0.0
    %97 = vmatpush1.msra.mxu0 0.0
    %98 = vmatprep.subr.mxu0 0.0
    %99 = vmatpush1.msra.mxu0 0.0
    %100 = vmatprep.subr.mxu0 0.0
    %101 = vmatpush1.msra.mxu0 0.0
    %102 = vmatprep.subr.mxu0 0.0
    %103 = vmatpush1.msra.mxu0 0.0
    %104 = vmatprep.subr.mxu0 0.0
    %105 = vmatpush1.msra.mxu0 0.0
    %106 = vmatprep.subr.mxu0 0.0
    %107 = vmatpush1.msra.mxu0 0.0
    %108 = vmatprep.subr.mxu0 0.0
    %109 = vmatpush1.msra.mxu0 0.0
    %110 = vmatprep.subr.mxu0 0.0
    %111 = vmatpush1.msra.mxu0 0.0
    %112 = vmatprep.subr.mxu0 0.0
    %113 = vmatpush1.msra.mxu0 0.0
    %114 = vmatprep.subr.mxu0 0.0
    %115 = vmatpush1.msra.mxu0 0.0
    %116 = vmatprep.subr.mxu0 0.0
    %117 = vmatpush1.msra.mxu0 0.0
    %118 = vmatprep.subr.mxu0 0.0
    %119 = vmatpush1.msra.mxu0 0.0
    %120 = vmatprep.subr.mxu0 0.0
    %121 = vmatpush1.msra.mxu0 0.0
    %122 = vmatprep.subr.mxu0 0.0
    %123 = vmatpush1.msra.mxu0 0.0
    %124 = vmatprep.subr.mxu0 0.0
    %125 = vmatpush1.msra.mxu0 0.0
    %126 = vmatprep.subr.mxu0 0.0
    %127 = vmatpush1.msra.mxu0 0.0
    %128 = vmatprep.subr.mxu0 0.0
    %129 = vmatpush1.msra.mxu0 0.0
    %130 = vmatprep.subr.mxu0 0.0
    %131 = vmatpush1.msra.mxu0 0.0
    %132 = vmatprep.subr.mxu0 0.0
    %133 = vmatpush1.msra.mxu0 0.0
    %134 = vmatprep.subr.mxu0 0.0
    %135 = vmatpush1.msra.mxu0 0.0
    %136 = vmatprep.subr.mxu0 0.0
    %137 = vmatpush1.msra.mxu0 0.0
    %138 = vmatprep.subr.mxu0 0.0
    %139 = vmatpush1.msra.mxu0 0.0
    %140 = vmatprep.subr.mxu0 0.0
    %141 = vmatpush1.msra.mxu0 0.0
    %142 = vmatprep.subr.mxu0 0.0
    %143 = vmatpush1.msra.mxu0 0.0
    %144 = vmatprep.subr.mxu0 0.0
    %145 = vmatpush1.msra.mxu0 0.0
    %146 = vmatprep.mubr.f32.mxu0 0.0
    %147 = vmatmul.mubr.f32.gmra.mrb[0].mxu0 %v77
    %v148 = vpop.f32.mrb[0].mxu0
    %v149 = vadd.f32 %v73, %v148
    %v150 = vpop.f32.mrb[0].mxu0
    %151 = vmatprep.mubr.f32.mxu0 0.0
    %152 = vmatmul.mubr.f32.gmra.mrb[0].mxu0 %v80
    %v153 = vpop.f32.mrb[0].mxu0
    %v154 = vadd.f32 %v73, %v153
    %v155 = vpop.f32.mrb[0].mxu0
    %156 = vdwg.mxu0
    %v157 = vld [vmem:[#allocation7] sm:$0xff]
    %v158 = vld [vmem:[#allocation7 + $0x8] sm:$0xff]
    %v159 = vld [vmem:[#allocation7 + $0x10] sm:$0xff]
    %v160 = vld [vmem:[#allocation7 + $0x18] sm:$0xff]
    %v161 = vld [vmem:[%s4] sm:$0x1]
    %v163 = vlaneseq
    %v164 = vshrl.u32 %v163, 7
    %v165 = vsub.s32 0, %v164
    %v166 = vrot.slane %v161, %v165
    %168 = vmatprep.subr.mxu0 0.0
    %169 = vmatpush1.msra.mxu0 %v157
    %170 = vmatprep.subr.mxu0 0.0
    %171 = vmatpush1.msra.mxu0 %v158
    %172 = vmatprep.subr.mxu0 0.0
    %173 = vmatpush1.msra.mxu0 %v159
    %174 = vmatprep.subr.mxu0 0.0
    %175 = vmatpush1.msra.mxu0 %v160
    %176 = vmatprep.subr.mxu0 0.0
    %177 = vmatpush1.msra.mxu0 0.0
    %178 = vmatprep.subr.mxu0 0.0
    %179 = vmatpush1.msra.mxu0 0.0
    %180 = vmatprep.subr.mxu0 0.0
    %181 = vmatpush1.msra.mxu0 0.0
    %182 = vmatprep.subr.mxu0 0.0
    %183 = vmatpush1.msra.mxu0 0.0
    %184 = vmatprep.subr.mxu0 0.0
    %185 = vmatpush1.msra.mxu0 0.0
    %186 = vmatprep.subr.mxu0 0.0
    %187 = vmatpush1.msra.mxu0 0.0
    %188 = vmatprep.subr.mxu0 0.0
    %189 = vmatpush1.msra.mxu0 0.0
    %190 = vmatprep.subr.mxu0 0.0
    %191 = vmatpush1.msra.mxu0 0.0
    %192 = vmatprep.subr.mxu0 0.0
    %193 = vmatpush1.msra.mxu0 0.0
    %194 = vmatprep.subr.mxu0 0.0
    %195 = vmatpush1.msra.mxu0 0.0
    %196 = vmatprep.subr.mxu0 0.0
    %197 = vmatpush1.msra.mxu0 0.0
    %198 = vmatprep.subr.mxu0 0.0
    %199 = vmatpush1.msra.mxu0 0.0
    %200 = vmatprep.subr.mxu0 0.0
    %201 = vmatpush1.msra.mxu0 0.0
    %202 = vmatprep.subr.mxu0 0.0
    %203 = vmatpush1.msra.mxu0 0.0
    %204 = vmatprep.subr.mxu0 0.0
    %205 = vmatpush1.msra.mxu0 0.0
    %206 = vmatprep.subr.mxu0 0.0
    %207 = vmatpush1.msra.mxu0 0.0
    %208 = vmatprep.subr.mxu0 0.0
    %209 = vmatpush1.msra.mxu0 0.0
    %210 = vmatprep.subr.mxu0 0.0
    %211 = vmatpush1.msra.mxu0 0.0
    %212 = vmatprep.subr.mxu0 0.0
    %213 = vmatpush1.msra.mxu0 0.0
    %214 = vmatprep.subr.mxu0 0.0
    %215 = vmatpush1.msra.mxu0 0.0
    %216 = vmatprep.subr.mxu0 0.0
    %217 = vmatpush1.msra.mxu0 0.0
    %218 = vmatprep.subr.mxu0 0.0
    %219 = vmatpush1.msra.mxu0 0.0
    %220 = vmatprep.subr.mxu0 0.0
    %221 = vmatpush1.msra.mxu0 0.0
    %222 = vmatprep.subr.mxu0 0.0
    %223 = vmatpush1.msra.mxu0 0.0
    %224 = vmatprep.subr.mxu0 0.0
    %225 = vmatpush1.msra.mxu0 0.0
    %226 = vmatprep.subr.mxu0 0.0
    %227 = vmatpush1.msra.mxu0 0.0
    %228 = vmatprep.subr.mxu0 0.0
    %229 = vmatpush1.msra.mxu0 0.0
    %230 = vmatprep.subr.mxu0 0.0
    %231 = vmatpush1.msra.mxu0 0.0
    %232 = vmatprep.mubr.f32.mxu0 0.0
    %233 = vmatmul.mubr.f32.gmra.mrb[0].mxu0 %v77
    %v234 = vpop.f32.mrb[0].mxu0
    %v235 = vadd.f32 %v166, %v234
    %v236 = vpop.f32.mrb[0].mxu0
    %237 = vmatprep.mubr.f32.mxu0 0.0
    %238 = vmatmul.mubr.f32.gmra.mrb[0].mxu0 %v80
    %v239 = vpop.f32.mrb[0].mxu0
    %v240 = vadd.f32 %v166, %v239
    %v241 = vpop.f32.mrb[0].mxu0
    %242 = vdwg.mxu0
    %v243 = vmax.f32 %v149, 0.0
    %v244 = vmax.f32 %v154, 0.0
    %v245 = vmul.f32 %v235, 0.5
    %v246 = vmul.f32 %v240, 0.5
    %v247 = vtanh.pop %v245
    %v248 = vtanh.pop %v246
    %v249 = vadd.f32 %v247, 1.0
    %v250 = vadd.f32 %v248, 1.0
    %v251 = vmul.f32 %v249, 0.5
    %v252 = vmul.f32 %v250, 0.5
    %v253 = vsub.f32 %v243, %v62
    %v254 = vsub.f32 %v244, %v63
    %v255 = vmul.f32 %v251, %v253
    %v256 = vmul.f32 %v252, %v254
    %v257 = vadd.f32 %v62, %v255
    %v258 = vadd.f32 %v63, %v256
    %259 = vst.msk [vmem:[#allocation8] sm:$0xff] %vm75, %v257
    %260 = vst.msk [vmem:[#allocation8 + $0x8] sm:$0xff] %vm75, %v258
    // Predicated region
    $region34: #{tpu_custom_call.1} parent=1 // pred_check
      _
    $region35: #{tpu_custom_call.1} parent=1 // pred_check_branch
      %262 = sbr.rel (0) target = $region37
    $region36: #{tpu_custom_call.1} parent=1 // pred_region
      %s264 = ssub.s32 256, 256
      %265 = vsyncadd [#allocation4], %s264
      %s266 = sshll.u32 [#allocation8], 4
      %s267 = int_to_ptr.vmem [resolvable:$true] %s266
      %272 = dma.vmem_to_hbm [thread:$0]  %s267, 256, %s5, [#allocation4], 128, 128, 8
    $region37: #{tpu_custom_call.1} parent=1 // pred_fallthru
      _
    // Predicated region
    $region38: #{tpu_custom_call.1} parent=1 // pred_check
      _
    $region39: #{tpu_custom_call.1} parent=1 // pred_check_branch
      %274 = sbr.rel (0) target = $region41
    $region40: #{tpu_custom_call.1} parent=1 // pred_region
      %275 = dma.done [#allocation4], 256
    $region41: #{tpu_custom_call.1} parent=1 // pred_fallthru
      _
    %276 = vsyncpa [#allocation3], 1
    %277 = vsyncpa [#allocation6], 1
    %278 = vsyncpa [#allocation4], 1

</llo_original>
